<compile_context>
chip_gen: v5e
topology: v5e:2x2
jax: 0.10.0
libtpu: 0.0.40
codegen_flags: <defaults>
</compile_context>

<pallas_src>
import numpy as np
import jax
import jax.numpy as jnp
from jax.experimental import pallas as pl
from jax.experimental.pallas import tpu as pltpu

HIDDEN = 256


def _round_up(n, m):
    return ((n + m - 1) // m) * m


def _orthogonal(key, shape, gain):
    """Deterministic orthogonal init (mirrors torch.nn.init.orthogonal_)."""
    rows, cols = shape
    n = max(rows, cols)
    a = jax.random.normal(key, (n, n), dtype=jnp.float32)
    q, r = jnp.linalg.qr(a)
    q = q * jnp.sign(jnp.diag(r))[None, :]
    return gain * q[:rows, :cols]


def critic_kernel(x_ref, a_ref, w1x_ref, w1a_ref, b1_ref, w2_ref, b2_ref,
                  w3_ref, b3_ref, o_ref):
    # Layer 1: split-K bf16 matmuls (x part + a part), f32 accumulation,
    # then f32 bias + relu on the VPU.
    h1 = jnp.dot(x_ref[...].astype(jnp.bfloat16), w1x_ref[...],
                 preferred_element_type=jnp.float32)
    h1 = h1 + jnp.dot(a_ref[...].astype(jnp.bfloat16), w1a_ref[...],
                      preferred_element_type=jnp.float32)
    h1 = jnp.maximum(h1 + b1_ref[...], 0.0)

    # Layer 2: 256x256 bf16 matmul, f32 accumulate, bias + relu in f32.
    h2 = jnp.dot(h1.astype(jnp.bfloat16), w2_ref[...],
                 preferred_element_type=jnp.float32) + b2_ref[...]
    h2 = jnp.maximum(h2, 0.0)

    # Layer 3 (256 -> 1): f32 VPU multiply + XLU lane reduction (avoids an
    # N=1 MXU pass). b3 is an SMEM scalar. Narrow (TM, 1) store.
    q = jnp.sum(h2 * w3_ref[...], axis=-1, keepdims=True)      # (TM, 1) f32
    o_ref[...] = q + b3_ref[0]


def critic_forward(x, a, params, *, tm=1024):
    """x: [B, obs_dim] f32, a: [B, act_dim] f32 -> q: [B, 1] f32."""
    w1x, w1a, b1, w2, b2, w3_row, b3 = params
    B, obs_dim = x.shape
    act_dim = a.shape[1]

    # Tile size: multiple of 8 (sublane), capped at `tm`.
    TM = min(tm, _round_up(B, 8))
    # v7x megacore: the batch axis is "parallel"; when the batch is large
    # enough, cap TM so there are >= 2 grid tiles (tiles stay >= 256 rows).
    if TM >= B and B >= 512:
        TM = _round_up((B + 1) // 2, 8)
    n_tiles = pl.cdiv(B, TM)  # ragged last block; no jnp.pad of the inputs

    # Rough cost hint for XLA scheduling around the custom call.
    flops = 2 * B * (obs_dim * HIDDEN + act_dim * HIDDEN + HIDDEN * HIDDEN + HIDDEN)
    bytes_accessed = (
        4 * B * (obs_dim + act_dim)                       # x, a (f32 in)
        + 2 * (obs_dim + act_dim + HIDDEN) * HIDDEN       # bf16 weights
        + 4 * (3 * HIDDEN + 1)                            # f32 biases + w3 row
        + 4 * B                                           # (B, 1) f32 output
    )
    cost = pl.CostEstimate(flops=flops, transcendentals=0,
                           bytes_accessed=bytes_accessed)

    tile = lambda cols: pl.BlockSpec((TM, cols), lambda i: (i, 0))      # batch-tiled
    resident = lambda shape: pl.BlockSpec(shape, lambda i: (0, 0))      # VMEM-resident

    out = pl.pallas_call(
        critic_kernel,
        out_shape=jax.ShapeDtypeStruct((B, 1), jnp.float32),
        grid=(n_tiles,),
        in_specs=[
            tile(obs_dim),                        # x
            tile(act_dim),                        # a
            resident((obs_dim, HIDDEN)),          # W1x (bf16)
            resident((act_dim, HIDDEN)),          # W1a (bf16)
            resident((1, HIDDEN)),                # b1  (f32)
            resident((HIDDEN, HIDDEN)),           # W2  (bf16)
            resident((1, HIDDEN)),                # b2  (f32)
            resident((1, HIDDEN)),                # W3 row (f32)
            pl.BlockSpec(memory_space=pltpu.MemorySpace.SMEM),  # b3 scalar
        ],
        out_specs=tile(1),
        compiler_params=pltpu.CompilerParams(
            dimension_semantics=("parallel",),
        ),
        cost_estimate=cost,
    )(x, a, w1x, w1a, b1, w2, b2, w3_row, b3)

    return out


def init_params(obs_dim, act_dim, seed=0):
    """Deterministic params. Weights orthogonal (gain=sqrt(2)) like layer_init;
    biases zero. W1 split into x/a halves; matmul weights pre-transposed to
    [in, out] and stored bf16 (MXU operands); biases & W3 row kept f32."""
    in_dim = obs_dim + act_dim
    gain = float(np.sqrt(2.0))
    k = jax.random.PRNGKey(seed)
    k1, k2, k3 = jax.random.split(k, 3)
    # torch Linear weight shape is [out, in].
    w1 = _orthogonal(k1, (HIDDEN, in_dim), gain)            # [256, in_dim]
    w2 = _orthogonal(k2, (HIDDEN, HIDDEN), gain)            # [256, 256]
    w3 = _orthogonal(k3, (1, HIDDEN), gain)                 # [1, 256]
    w1x = jnp.asarray(w1[:, :obs_dim].T, dtype=jnp.bfloat16)   # [obs_dim, 256]
    w1a = jnp.asarray(w1[:, obs_dim:].T, dtype=jnp.bfloat16)   # [act_dim, 256]
    w2t = jnp.asarray(w2.T, dtype=jnp.bfloat16)                # [256, 256]
    b1 = jnp.zeros((1, HIDDEN), jnp.float32)
    b2 = jnp.zeros((1, HIDDEN), jnp.float32)
    w3_row = jnp.asarray(w3, dtype=jnp.float32)                # [1, 256]
    b3 = jnp.zeros((1,), jnp.float32)
    return (w1x, w1a, b1, w2t, b2, w3_row, b3)


def reference_forward(x, a, params):
    """Pure-JAX reference with the same mixed precision as the kernel."""
    w1x, w1a, b1, w2, b2, w3_row, b3 = params
    h1 = jnp.dot(x.astype(jnp.bfloat16), w1x, preferred_element_type=jnp.float32)
    h1 = h1 + jnp.dot(a.astype(jnp.bfloat16), w1a, preferred_element_type=jnp.float32)
    h1 = jnp.maximum(h1 + b1, 0.0)
    h2 = jnp.dot(h1.astype(jnp.bfloat16), w2, preferred_element_type=jnp.float32) + b2
    h2 = jnp.maximum(h2, 0.0)
    return jnp.sum(h2 * w3_row, axis=-1, keepdims=True) + b3[0]


if __name__ == "__main__":
    B, OBS_DIM, ACT_DIM = 2, 16, 8
    key = jax.random.PRNGKey(0)
    kx, ka = jax.random.split(key)
    x = jax.random.normal(kx, (B, OBS_DIM), dtype=jnp.float32)
    a = jax.random.normal(ka, (B, ACT_DIM), dtype=jnp.float32)

    params = init_params(OBS_DIM, ACT_DIM, seed=0)

    q = critic_forward(x, a, params)
    q = jax.block_until_ready(q)

    q_ref = reference_forward(x, a, params)
    np.testing.assert_allclose(np.asarray(q), np.asarray(q_ref),
                               rtol=2e-3, atol=2e-3)
    assert q.shape == (B, 1)

    print("KERNEL_OK")
</pallas_src>

<mosaic_0001>
module attributes {stable_mosaic.version = 11 : i64} {
  func.func @critic_kernel(%arg0: i32, %arg1: memref<8x16xf32, #tpu.memory_space<vmem>>, %arg2: memref<8x8xf32, #tpu.memory_space<vmem>>, %arg3: memref<16x256xbf16, #tpu.memory_space<vmem>>, %arg4: memref<8x256xbf16, #tpu.memory_space<vmem>>, %arg5: memref<1x256xf32, #tpu.memory_space<vmem>>, %arg6: memref<256x256xbf16, #tpu.memory_space<vmem>>, %arg7: memref<1x256xf32, #tpu.memory_space<vmem>>, %arg8: memref<1x256xf32, #tpu.memory_space<vmem>>, %arg9: memref<1xf32, #tpu.memory_space<smem>>, %arg10: memref<8x1xf32, #tpu.memory_space<vmem>>) attributes {dimension_semantics = [#tpu.dimension_semantics<parallel>], iteration_bounds = array<i64: 1>, scalar_prefetch = 0 : i64, scratch_operands = 0 : i64, tpu.core_type = #tpu.core_type<tc>, window_params = [{transform_indices = @transform_0, window_bounds = array<i64: 8, 16>}, {transform_indices = @transform_1, window_bounds = array<i64: 8, 8>}, {pipeline_mode = #tpu.pipeline_mode<synchronous>, transform_indices = @transform_2, window_bounds = array<i64: 16, 256>}, {pipeline_mode = #tpu.pipeline_mode<synchronous>, transform_indices = @transform_3, window_bounds = array<i64: 8, 256>}, {pipeline_mode = #tpu.pipeline_mode<synchronous>, transform_indices = @transform_4, window_bounds = array<i64: 1, 256>}, {pipeline_mode = #tpu.pipeline_mode<synchronous>, transform_indices = @transform_5, window_bounds = array<i64: 256, 256>}, {pipeline_mode = #tpu.pipeline_mode<synchronous>, transform_indices = @transform_6, window_bounds = array<i64: 1, 256>}, {pipeline_mode = #tpu.pipeline_mode<synchronous>, transform_indices = @transform_7, window_bounds = array<i64: 1, 256>}, {transform_indices = @transform_8, window_bounds = array<i64: 1>}, {transform_indices = @transform_9, window_bounds = array<i64: 8, 1>}]} {
    %c0 = arith.constant 0 : index
    %c0_0 = arith.constant 0 : index
    %0 = vector.load %arg1[%c0, %c0_0] : memref<8x16xf32, #tpu.memory_space<vmem>>, vector<8x16xf32>
    %1 = arith.truncf %0 : vector<8x16xf32> to vector<8x16xbf16>
    %c0_1 = arith.constant 0 : index
    %c0_2 = arith.constant 0 : index
    %2 = vector.load %arg3[%c0_1, %c0_2] : memref<16x256xbf16, #tpu.memory_space<vmem>>, vector<16x256xbf16>
    %cst = arith.constant dense<0.000000e+00> : vector<8x256xf32>
    %3 = tpu.matmul %1, %2, %cst {dimension_numbers = #tpu.dot_dimension_numbers<[1], [0], [0], [1], [0, 0, 1, 1], [], []>} : vector<8x16xbf16>, vector<16x256xbf16>, vector<8x256xf32> -> vector<8x256xf32>
    %c0_3 = arith.constant 0 : index
    %c0_4 = arith.constant 0 : index
    %4 = vector.load %arg2[%c0_3, %c0_4] : memref<8x8xf32, #tpu.memory_space<vmem>>, vector<8x8xf32>
    %5 = arith.truncf %4 : vector<8x8xf32> to vector<8x8xbf16>
    %c0_5 = arith.constant 0 : index
    %c0_6 = arith.constant 0 : index
    %6 = vector.load %arg4[%c0_5, %c0_6] : memref<8x256xbf16, #tpu.memory_space<vmem>>, vector<8x256xbf16>
    %cst_7 = arith.constant dense<0.000000e+00> : vector<8x256xf32>
    %7 = tpu.matmul %5, %6, %cst_7 {dimension_numbers = #tpu.dot_dimension_numbers<[1], [0], [0], [1], [0, 0, 1, 1], [], []>} : vector<8x8xbf16>, vector<8x256xbf16>, vector<8x256xf32> -> vector<8x256xf32>
    %8 = arith.addf %3, %7 : vector<8x256xf32>
    %c0_8 = arith.constant 0 : index
    %c0_9 = arith.constant 0 : index
    %9 = vector.load %arg5[%c0_8, %c0_9] : memref<1x256xf32, #tpu.memory_space<vmem>>, vector<1x256xf32>
    %10 = vector.broadcast %9 : vector<1x256xf32> to vector<8x256xf32>
    %11 = arith.addf %8, %10 : vector<8x256xf32>
    %cst_10 = arith.constant 0.000000e+00 : f32
    %12 = vector.broadcast %cst_10 : f32 to vector<8x256xf32>
    %13 = arith.maximumf %11, %12 : vector<8x256xf32>
    %14 = arith.truncf %13 : vector<8x256xf32> to vector<8x256xbf16>
    %c0_11 = arith.constant 0 : index
    %c0_12 = arith.constant 0 : index
    %15 = vector.load %arg6[%c0_11, %c0_12] : memref<256x256xbf16, #tpu.memory_space<vmem>>, vector<256x256xbf16>
    %cst_13 = arith.constant dense<0.000000e+00> : vector<8x256xf32>
    %16 = tpu.matmul %14, %15, %cst_13 {dimension_numbers = #tpu.dot_dimension_numbers<[1], [0], [0], [1], [0, 0, 1, 1], [], []>} : vector<8x256xbf16>, vector<256x256xbf16>, vector<8x256xf32> -> vector<8x256xf32>
    %c0_14 = arith.constant 0 : index
    %c0_15 = arith.constant 0 : index
    %17 = vector.load %arg7[%c0_14, %c0_15] : memref<1x256xf32, #tpu.memory_space<vmem>>, vector<1x256xf32>
    %18 = vector.broadcast %17 : vector<1x256xf32> to vector<8x256xf32>
    %19 = arith.addf %16, %18 : vector<8x256xf32>
    %cst_16 = arith.constant 0.000000e+00 : f32
    %20 = vector.broadcast %cst_16 : f32 to vector<8x256xf32>
    %21 = arith.maximumf %19, %20 : vector<8x256xf32>
    %c0_17 = arith.constant 0 : index
    %c0_18 = arith.constant 0 : index
    %22 = vector.load %arg8[%c0_17, %c0_18] : memref<1x256xf32, #tpu.memory_space<vmem>>, vector<1x256xf32>
    %23 = vector.broadcast %22 : vector<1x256xf32> to vector<8x256xf32>
    %24 = arith.mulf %21, %23 : vector<8x256xf32>
    %cst_19 = arith.constant dense<0.000000e+00> : vector<8xf32>
    %25 = vector.multi_reduction <add>, %24, %cst_19 [1] : vector<8x256xf32> to vector<8xf32>
    %26 = vector.shape_cast %25 : vector<8xf32> to vector<8x1xf32>
    %c0_20 = arith.constant 0 : index
    %27 = memref.load %arg9[%c0_20] : memref<1xf32, #tpu.memory_space<smem>>
    %28 = vector.broadcast %27 : f32 to vector<8x1xf32>
    %29 = arith.addf %26, %28 : vector<8x1xf32>
    %c0_21 = arith.constant 0 : index
    %c0_22 = arith.constant 0 : index
    %30 = vector.load %arg10[%c0_21, %c0_22] : memref<8x1xf32, #tpu.memory_space<vmem>>, vector<8x1xf32>
    tpu.vector_store %arg10[%c0_21, %c0_22], %29 {strides = array<i32>} : memref<8x1xf32, #tpu.memory_space<vmem>>, vector<8x1xf32>,
    return
  }
  func.func @transform_0(%arg0: i32) -> (i32, i32) {
    %c0_i32 = arith.constant 0 : i32
    %c0_i32_0 = arith.constant 0 : i32
    return %arg0, %c0_i32 : i32, i32
  }
  func.func @transform_1(%arg0: i32) -> (i32, i32) {
    %c0_i32 = arith.constant 0 : i32
    %c0_i32_0 = arith.constant 0 : i32
    return %arg0, %c0_i32 : i32, i32
  }
  func.func @transform_2(%arg0: i32) -> (i32, i32) {
    %c0_i32 = arith.constant 0 : i32
    %c0_i32_0 = arith.constant 0 : i32
    %c0_i32_1 = arith.constant 0 : i32
    return %c0_i32, %c0_i32_0 : i32, i32
  }
  func.func @transform_3(%arg0: i32) -> (i32, i32) {
    %c0_i32 = arith.constant 0 : i32
    %c0_i32_0 = arith.constant 0 : i32
    %c0_i32_1 = arith.constant 0 : i32
    return %c0_i32, %c0_i32_0 : i32, i32
  }
  func.func @transform_4(%arg0: i32) -> (i32, i32) {
    %c0_i32 = arith.constant 0 : i32
    %c0_i32_0 = arith.constant 0 : i32
    %c0_i32_1 = arith.constant 0 : i32
    return %c0_i32, %c0_i32_0 : i32, i32
  }
  func.func @transform_5(%arg0: i32) -> (i32, i32) {
    %c0_i32 = arith.constant 0 : i32
    %c0_i32_0 = arith.constant 0 : i32
    %c0_i32_1 = arith.constant 0 : i32
    return %c0_i32, %c0_i32_0 : i32, i32
  }
  func.func @transform_6(%arg0: i32) -> (i32, i32) {
    %c0_i32 = arith.constant 0 : i32
    %c0_i32_0 = arith.constant 0 : i32
    %c0_i32_1 = arith.constant 0 : i32
    return %c0_i32, %c0_i32_0 : i32, i32
  }
  func.func @transform_7(%arg0: i32) -> (i32, i32) {
    %c0_i32 = arith.constant 0 : i32
    %c0_i32_0 = arith.constant 0 : i32
    %c0_i32_1 = arith.constant 0 : i32
    return %c0_i32, %c0_i32_0 : i32, i32
  }
  func.func @transform_8(%arg0: i32) -> i32 {
    %c0_i32 = arith.constant 0 : i32
    %c0_i32_0 = arith.constant 0 : i32
    return %c0_i32 : i32
  }
  func.func @transform_9(%arg0: i32) -> (i32, i32) {
    %c0_i32 = arith.constant 0 : i32
    %c0_i32_0 = arith.constant 0 : i32
    return %arg0, %c0_i32 : i32, i32
  }
}

</mosaic_0001>

<llo_original>
// kernel: tpu_custom_call.1
$region0: #{tpu_custom_call.1}
  #allocation0 [shape = 'u32[]', space=smem, size = 0x4, offset = 0x4, fixed_abs, tag = 'smem constant byte address 0x4 - core index']
  #allocation1 [shape = 'u32[72,128]{1,0:T(1,128)}', space=vmem, size = 0x9000, scoped, tag = 'internal scratch']
  #allocation2 [shape = 'f32[1]{0:T(128)S(6)}', space=smem, size = 0x200, scoped, tag = 'scoped memory for tpu_custom_call.1']
  %s0 = inlined_call_operand.vmem [shape: f32[2,16], index: 0, kind: input, shape index: {}]
  %s1 = inlined_call_operand.hbm [shape: f32[2,8], index: 1, kind: input, shape index: {}]
  %s2 = inlined_call_operand.hbm [shape: bf16[16,256], index: 2, kind: input, shape index: {}]
  %s3 = inlined_call_operand.hbm [shape: bf16[8,256], index: 3, kind: input, shape index: {}]
  %s4 = inlined_call_operand.vmem [shape: f32[1,256], index: 4, kind: input, shape index: {}]
  %s5 = inlined_call_operand.hbm [shape: bf16[256,256], index: 5, kind: input, shape index: {}]
  %s6 = inlined_call_operand.vmem [shape: f32[1,256], index: 6, kind: input, shape index: {}]
  %s7 = inlined_call_operand.vmem [shape: f32[1,256], index: 7, kind: input, shape index: {}]
  %s8 = inlined_call_operand.<no memory space> [shape: f32[1], index: 8, kind: input, shape index: {}]
  %s9 = inlined_call_operand.vmem [shape: f32[2,1], index: 9, kind: output, shape index: {}]
  %s10 = sld [smem:[#allocation0]]
  $region92: #{tpu_custom_call.1} parent=0
    _
  %s12 = ssub.s32 1, %s10
  %s13 = scalar_select 0, %s12, %s10
  %14 = sst [smem:[#allocation2]] %s8
  $region1: #{tpu_custom_call.1} parent=0
    #allocation3 [shape = 'u8[4096]{0}', space=vmem, size = 0x1000, scoped, tag = 'input window, operand 1, single buffered']
    #allocation4 [shape = 's32[1]{0}', space=sflag, size = 0x4, scoped, tag = 'scoped memory for tpu_custom_call.1']
    #allocation5 [shape = 'u8[8192]{0}', space=vmem, size = 0x2000, scoped, tag = 'input window, operand 2, single buffered']
    #allocation6 [shape = 's32[1]{0}', space=sflag, size = 0x4, scoped, tag = 'scoped memory for tpu_custom_call.1']
    #allocation7 [shape = 'u8[4096]{0}', space=vmem, size = 0x1000, scoped, tag = 'input window, operand 3, single buffered']
    #allocation8 [shape = 'u8[131072]{0}', space=vmem, size = 0x20000, scoped, tag = 'input window, operand 5, single buffered']
    #allocation9 [shape = 's32[1]{0}', space=sflag, size = 0x4, scoped, tag = 'scoped memory for tpu_custom_call.1']
    #allocation10 [shape = 'u8[4096]{0}', space=vmem, size = 0x1000, scoped, tag = 'output window, operand 0, single buffered']
    %15 = vsyncpa [#allocation4], 0
    %16 = vsyncpa [#allocation6], 0
    %17 = vsyncpa [#allocation9], 0
    // Predicated region
    $region2: #{tpu_custom_call.1} parent=1 // pred_check
      _
    $region3: #{tpu_custom_call.1} parent=1 // pred_check_branch
      %19 = sbr.rel (0) target = $region5
    $region4: #{tpu_custom_call.1} parent=1 // pred_region
      _
    $region5: #{tpu_custom_call.1} parent=1 // pred_fallthru
      _
    // Predicated region
    $region6: #{tpu_custom_call.1} parent=1 // pred_check
      _
    $region7: #{tpu_custom_call.1} parent=1 // pred_check_branch
      %21 = sbr.rel (0) target = $region9
    $region8: #{tpu_custom_call.1} parent=1 // pred_region
      %23 = vsyncadd [#allocation4], 96
      %s24 = sshll.u32 %s1, 4
      %s25 = int_to_ptr.hbm [resolvable:$true] %s24
      %s26 = sshll.u32 [#allocation3], 4
      %s27 = int_to_ptr.vmem [resolvable:$true] %s26
      %32 = dma.hbm_to_vmem [thread:$0]  %s25, 32, %s27, [#allocation4], 32, 32, 2
    $region9: #{tpu_custom_call.1} parent=1 // pred_fallthru
      _
    // Predicated region
    $region10: #{tpu_custom_call.1} parent=1 // pred_check
      _
    $region11: #{tpu_custom_call.1} parent=1 // pred_check_branch
      %34 = sbr.rel (0) target = $region13
    $region12: #{tpu_custom_call.1} parent=1 // pred_region
      %36 = vsyncadd [#allocation6], 0
      %s37 = sshll.u32 %s2, 4
      %s38 = int_to_ptr.hbm [resolvable:$true] %s37
      %s39 = sshll.u32 [#allocation5], 4
      %s40 = int_to_ptr.vmem [resolvable:$true] %s39
      %45 = dma.hbm_to_vmem [thread:$0]  %s38, 256, %s40, [#allocation6], 128, 128, 8
    $region13: #{tpu_custom_call.1} parent=1 // pred_fallthru
      _
    // Predicated region
    $region14: #{tpu_custom_call.1} parent=1 // pred_check
      _
    $region15: #{tpu_custom_call.1} parent=1 // pred_check_branch
      %47 = sbr.rel (0) target = $region17
    $region16: #{tpu_custom_call.1} parent=1 // pred_region
      %49 = vsyncadd [#allocation6], 0
      %s51 = sshll.u32 %s3, 4
      %s52 = int_to_ptr.hbm [resolvable:$true] %s51
      %s53 = sshll.u32 [#allocation7], 4
      %s54 = int_to_ptr.vmem [resolvable:$true] %s53
      %56 = dma.hbm_to_vmem [thread:$0]  %s52, 128, %s54, [#allocation6]
    $region17: #{tpu_custom_call.1} parent=1 // pred_fallthru
      _
    // Predicated region
    $region18: #{tpu_custom_call.1} parent=1 // pred_check
      _
    $region19: #{tpu_custom_call.1} parent=1 // pred_check_branch
      %58 = sbr.rel (0) target = $region21
    $region20: #{tpu_custom_call.1} parent=1 // pred_region
      _
    $region21: #{tpu_custom_call.1} parent=1 // pred_fallthru
      _
    // Predicated region
    $region22: #{tpu_custom_call.1} parent=1 // pred_check
      _
    $region23: #{tpu_custom_call.1} parent=1 // pred_check_branch
      %60 = sbr.rel (0) target = $region25
    $region24: #{tpu_custom_call.1} parent=1 // pred_region
      %62 = vsyncadd [#allocation9], 0
      %s63 = sshll.u32 %s5, 4
      %s64 = int_to_ptr.hbm [resolvable:$true] %s63
      %s65 = sshll.u32 [#allocation8], 4
      %s66 = int_to_ptr.vmem [resolvable:$true] %s65
      %71 = dma.hbm_to_vmem [thread:$0]  %s64, 4096, %s66, [#allocation9], 128, 128, 8
    $region25: #{tpu_custom_call.1} parent=1 // pred_fallthru
      _
    // Predicated region
    $region26: #{tpu_custom_call.1} parent=1 // pred_check
      _
    $region27: #{tpu_custom_call.1} parent=1 // pred_check_branch
      %73 = sbr.rel (0) target = $region29
    $region28: #{tpu_custom_call.1} parent=1 // pred_region
      _
    $region29: #{tpu_custom_call.1} parent=1 // pred_fallthru
      _
    // Predicated region
    $region30: #{tpu_custom_call.1} parent=1 // pred_check
      _
    $region31: #{tpu_custom_call.1} parent=1 // pred_check_branch
      %75 = sbr.rel (0) target = $region33
    $region32: #{tpu_custom_call.1} parent=1 // pred_region
      _
    $region33: #{tpu_custom_call.1} parent=1 // pred_fallthru
      _
    // Predicated region
    $region34: #{tpu_custom_call.1} parent=1 // pred_check
      _
    $region35: #{tpu_custom_call.1} parent=1 // pred_check_branch
      %77 = sbr.rel (0) target = $region37
    $region36: #{tpu_custom_call.1} parent=1 // pred_region
      _
    $region37: #{tpu_custom_call.1} parent=1 // pred_fallthru
      _
    // Predicated region
    $region38: #{tpu_custom_call.1} parent=1 // pred_check
      _
    $region39: #{tpu_custom_call.1} parent=1 // pred_check_branch
      %79 = sbr.rel (0) target = $region41
    $region40: #{tpu_custom_call.1} parent=1 // pred_region
      %81 = dma.done [#allocation4], 128
    $region41: #{tpu_custom_call.1} parent=1 // pred_fallthru
      _
    // Predicated region
    $region42: #{tpu_custom_call.1} parent=1 // pred_check
      _
    $region43: #{tpu_custom_call.1} parent=1 // pred_check_branch
      %83 = sbr.rel (0) target = $region45
    $region44: #{tpu_custom_call.1} parent=1 // pred_region
      %85 = dma.done [#allocation6], 256
    $region45: #{tpu_custom_call.1} parent=1 // pred_fallthru
      _
    // Predicated region
    $region46: #{tpu_custom_call.1} parent=1 // pred_check
      _
    $region47: #{tpu_custom_call.1} parent=1 // pred_check_branch
      %87 = sbr.rel (0) target = $region49
    $region48: #{tpu_custom_call.1} parent=1 // pred_region
      %89 = dma.done [#allocation6], 128
    $region49: #{tpu_custom_call.1} parent=1 // pred_fallthru
      _
    // Predicated region
    $region50: #{tpu_custom_call.1} parent=1 // pred_check
      _
    $region51: #{tpu_custom_call.1} parent=1 // pred_check_branch
      %91 = sbr.rel (0) target = $region53
    $region52: #{tpu_custom_call.1} parent=1 // pred_region
      %93 = dma.done [#allocation9], 4096
    $region53: #{tpu_custom_call.1} parent=1 // pred_fallthru
      _
    %v95 = vld [vmem:[%s0] sm:$0xff]
    %v96 = vpack.c.bf16 %v95, %v95
    %v97 = vld [vmem:[#allocation5] sm:$0xff]
    %v98 = vld [vmem:[#allocation5 + $0x8] sm:$0xff]
    %v99 = vld [vmem:[#allocation3] sm:$0xff]
    %v100 = vpack.c.bf16 %v99, %v99
    %v101 = vld [vmem:[#allocation7] sm:$0xff]
    %v103 = vunpack.c.l.b16 %v101
    %v104 = vunpack.c.h.b16 %v101
    %v105 = vpack.c.b16 %v103, %v103
    %v106 = vpack.c.b16 %v104, %v104
    %vm107 = vcmask 64512
    %v109 = vsel %vm107, %v100, 0
    %vm111 = vcmask 1043456
    %v113 = vsel %vm111, %v105, 0
    %v116 = vsel %vm111, %v106, 0
    %118 = vmatpush.bf16.msra.mxu0 0
    %119 = vmatpush.bf16.msra.mxu0 0
    %120 = vmatpush.bf16.msra.mxu0 0
    %121 = vmatpush.bf16.msra.mxu0 0
    %122 = vmatpush.bf16.msra.mxu0 0
    %123 = vmatpush.bf16.msra.mxu0 0
    %124 = vmatpush.bf16.msra.mxu0 0
    %125 = vmatpush.bf16.msra.mxu0 %v113
    %126 = vmatmul.bf16.gmra.mxu0 %v109
    %v127 = vpop.f32.mrf.mxu0
    %v128 = vadd.f32 0.0, %v127
    %v129 = vpop.f32.mrf.mxu0
    %130 = vdwg.mxu0
    %131 = vmatpush.bf16.msra.mxu0 0
    %132 = vmatpush.bf16.msra.mxu0 0
    %133 = vmatpush.bf16.msra.mxu0 0
    %134 = vmatpush.bf16.msra.mxu0 0
    %135 = vmatpush.bf16.msra.mxu0 0
    %136 = vmatpush.bf16.msra.mxu0 0
    %137 = vmatpush.bf16.msra.mxu0 0
    %138 = vmatpush.bf16.msra.mxu0 %v116
    %139 = vmatmul.bf16.gmra.mxu0 %v109
    %v140 = vpop.f32.mrf.mxu0
    %v141 = vadd.f32 0.0, %v140
    %v142 = vpop.f32.mrf.mxu0
    %143 = vdwg.mxu0
    %v146 = vunpack.c.l.b16 %v97
    %v147 = vunpack.c.h.b16 %v97
    %v148 = vunpack.c.l.b16 %v98
    %v149 = vunpack.c.h.b16 %v98
    %v150 = vpack.c.b16 %v148, %v146
    %v151 = vpack.c.b16 %v149, %v147
    %vm154 = vcmask 130048
    %v156 = vsel %vm154, %v96, 0
    %158 = vmatpush.bf16.msra.mxu0 0
    %159 = vmatpush.bf16.msra.mxu0 0
    %160 = vmatpush.bf16.msra.mxu0 0
    %161 = vmatpush.bf16.msra.mxu0 0
    %162 = vmatpush.bf16.msra.mxu0 0
    %163 = vmatpush.bf16.msra.mxu0 0
    %164 = vmatpush.bf16.msra.mxu0 0
    %165 = vmatpush.bf16.msra.mxu0 %v150
    %166 = vmatmul.bf16.gmra.mxu0 %v156
    %v167 = vpop.f32.mrf.mxu0
    %v168 = vadd.f32 %v128, %v167
    %v169 = vpop.f32.mrf.mxu0
    %170 = vdwg.mxu0
    %171 = vmatpush.bf16.msra.mxu0 0
    %172 = vmatpush.bf16.msra.mxu0 0
    %173 = vmatpush.bf16.msra.mxu0 0
    %174 = vmatpush.bf16.msra.mxu0 0
    %175 = vmatpush.bf16.msra.mxu0 0
    %176 = vmatpush.bf16.msra.mxu0 0
    %177 = vmatpush.bf16.msra.mxu0 0
    %178 = vmatpush.bf16.msra.mxu0 %v151
    %179 = vmatmul.bf16.gmra.mxu0 %v156
    %v180 = vpop.f32.mrf.mxu0
    %v181 = vadd.f32 %v141, %v180
    %v182 = vpop.f32.mrf.mxu0
    %183 = vdwg.mxu0
    %v184 = vld [vmem:[%s4] sm:$0x3]
    %v186 = vperm.slane %v184, 0
    %v187 = vperm.slane %v184, 1
    %v190 = vadd.f32 %v168, %v186
    %v191 = vadd.f32 %v181, %v187
    %v192 = vmax.f32 %v190, 0.0
    %v193 = vmax.f32 %v191, 0.0
    %v194 = vpack.c.bf16 %v192, %v192
    %v195 = vpack.c.bf16 %v193, %v193
    %v196 = vld [vmem:[#allocation8] sm:$0xff]
    %v197 = vld [vmem:[#allocation8 + $0x8] sm:$0xff]
    %v198 = vld [vmem:[#allocation8 + $0x10] sm:$0xff]
    %v199 = vld [vmem:[#allocation8 + $0x18] sm:$0xff]
    %v200 = vld [vmem:[#allocation8 + $0x20] sm:$0xff]
    %v201 = vld [vmem:[#allocation8 + $0x28] sm:$0xff]
    %v202 = vld [vmem:[#allocation8 + $0x30] sm:$0xff]
    %v203 = vld [vmem:[#allocation8 + $0x38] sm:$0xff]
    %v204 = vld [vmem:[#allocation8 + $0x40] sm:$0xff]
    %v205 = vld [vmem:[#allocation8 + $0x48] sm:$0xff]
    %v206 = vld [vmem:[#allocation8 + $0x50] sm:$0xff]
    %v207 = vld [vmem:[#allocation8 + $0x58] sm:$0xff]
    %v208 = vld [vmem:[#allocation8 + $0x60] sm:$0xff]
    %v209 = vld [vmem:[#allocation8 + $0x68] sm:$0xff]
    %v210 = vld [vmem:[#allocation8 + $0x70] sm:$0xff]
    %v211 = vld [vmem:[#allocation8 + $0x78] sm:$0xff]
    %v212 = vld [vmem:[#allocation8 + $0x80] sm:$0xff]
    %v213 = vld [vmem:[#allocation8 + $0x88] sm:$0xff]
    %v214 = vld [vmem:[#allocation8 + $0x90] sm:$0xff]
    %v215 = vld [vmem:[#allocation8 + $0x98] sm:$0xff]
    %v216 = vld [vmem:[#allocation8 + $0xa0] sm:$0xff]
    %v217 = vld [vmem:[#allocation8 + $0xa8] sm:$0xff]
    %v218 = vld [vmem:[#allocation8 + $0xb0] sm:$0xff]
    %v219 = vld [vmem:[#allocation8 + $0xb8] sm:$0xff]
    %v220 = vld [vmem:[#allocation8 + $0xc0] sm:$0xff]
    %v221 = vld [vmem:[#allocation8 + $0xc8] sm:$0xff]
    %v222 = vld [vmem:[#allocation8 + $0xd0] sm:$0xff]
    %v223 = vld [vmem:[#allocation8 + $0xd8] sm:$0xff]
    %v224 = vld [vmem:[#allocation8 + $0xe0] sm:$0xff]
    %v225 = vld [vmem:[#allocation8 + $0xe8] sm:$0xff]
    %v226 = vld [vmem:[#allocation8 + $0xf0] sm:$0xff]
    %v227 = vld [vmem:[#allocation8 + $0xf8] sm:$0xff]
    %v228 = vld [vmem:[%s6] sm:$0x3]
    %v230 = vperm.slane %v228, 0
    %v231 = vperm.slane %v228, 1
    %v266 = vunpack.c.l.b16 %v196
    %v267 = vunpack.c.h.b16 %v196
    %v268 = vunpack.c.l.b16 %v197
    %v269 = vunpack.c.h.b16 %v197
    %v270 = vunpack.c.l.b16 %v198
    %v271 = vunpack.c.h.b16 %v198
    %v272 = vunpack.c.l.b16 %v199
    %v273 = vunpack.c.h.b16 %v199
    %v274 = vunpack.c.l.b16 %v200
    %v275 = vunpack.c.h.b16 %v200
    %v276 = vunpack.c.l.b16 %v201
    %v277 = vunpack.c.h.b16 %v201
    %v278 = vunpack.c.l.b16 %v202
    %v279 = vunpack.c.h.b16 %v202
    %v280 = vunpack.c.l.b16 %v203
    %v281 = vunpack.c.h.b16 %v203
    %v282 = vunpack.c.l.b16 %v204
    %v283 = vunpack.c.h.b16 %v204
    %v284 = vunpack.c.l.b16 %v205
    %v285 = vunpack.c.h.b16 %v205
    %v286 = vunpack.c.l.b16 %v206
    %v287 = vunpack.c.h.b16 %v206
    %v288 = vunpack.c.l.b16 %v207
    %v289 = vunpack.c.h.b16 %v207
    %v290 = vunpack.c.l.b16 %v208
    %v291 = vunpack.c.h.b16 %v208
    %v292 = vunpack.c.l.b16 %v209
    %v293 = vunpack.c.h.b16 %v209
    %v294 = vunpack.c.l.b16 %v210
    %v295 = vunpack.c.h.b16 %v210
    %v296 = vunpack.c.l.b16 %v211
    %v297 = vunpack.c.h.b16 %v211
    %v298 = vunpack.c.l.b16 %v212
    %v299 = vunpack.c.h.b16 %v212
    %v300 = vunpack.c.l.b16 %v213
    %v301 = vunpack.c.h.b16 %v213
    %v302 = vunpack.c.l.b16 %v214
    %v303 = vunpack.c.h.b16 %v214
    %v304 = vunpack.c.l.b16 %v215
    %v305 = vunpack.c.h.b16 %v215
    %v306 = vunpack.c.l.b16 %v216
    %v307 = vunpack.c.h.b16 %v216
    %v308 = vunpack.c.l.b16 %v217
    %v309 = vunpack.c.h.b16 %v217
    %v310 = vunpack.c.l.b16 %v218
    %v311 = vunpack.c.h.b16 %v218
    %v312 = vunpack.c.l.b16 %v219
    %v313 = vunpack.c.h.b16 %v219
    %v314 = vunpack.c.l.b16 %v220
    %v315 = vunpack.c.h.b16 %v220
    %v316 = vunpack.c.l.b16 %v221
    %v317 = vunpack.c.h.b16 %v221
    %v318 = vunpack.c.l.b16 %v222
    %v319 = vunpack.c.h.b16 %v222
    %v320 = vunpack.c.l.b16 %v223
    %v321 = vunpack.c.h.b16 %v223
    %v322 = vunpack.c.l.b16 %v224
    %v323 = vunpack.c.h.b16 %v224
    %v324 = vunpack.c.l.b16 %v225
    %v325 = vunpack.c.h.b16 %v225
    %v326 = vunpack.c.l.b16 %v226
    %v327 = vunpack.c.h.b16 %v226
    %v328 = vunpack.c.l.b16 %v227
    %v329 = vunpack.c.h.b16 %v227
    %v330 = vpack.c.b16 %v268, %v266
    %v331 = vpack.c.b16 %v269, %v267
    %v332 = vpack.c.b16 %v272, %v270
    %v333 = vpack.c.b16 %v273, %v271
    %v334 = vpack.c.b16 %v276, %v274
    %v335 = vpack.c.b16 %v277, %v275
    %v336 = vpack.c.b16 %v280, %v278
    %v337 = vpack.c.b16 %v281, %v279
    %v338 = vpack.c.b16 %v284, %v282
    %v339 = vpack.c.b16 %v285, %v283
    %v340 = vpack.c.b16 %v288, %v286
    %v341 = vpack.c.b16 %v289, %v287
    %v342 = vpack.c.b16 %v292, %v290
    %v343 = vpack.c.b16 %v293, %v291
    %v344 = vpack.c.b16 %v296, %v294
    %v345 = vpack.c.b16 %v297, %v295
    %v346 = vpack.c.b16 %v300, %v298
    %v347 = vpack.c.b16 %v301, %v299
    %v348 = vpack.c.b16 %v304, %v302
    %v349 = vpack.c.b16 %v305, %v303
    %v350 = vpack.c.b16 %v308, %v306
    %v351 = vpack.c.b16 %v309, %v307
    %v352 = vpack.c.b16 %v312, %v310
    %v353 = vpack.c.b16 %v313, %v311
    %v354 = vpack.c.b16 %v316, %v314
    %v355 = vpack.c.b16 %v317, %v315
    %v356 = vpack.c.b16 %v320, %v318
    %v357 = vpack.c.b16 %v321, %v319
    %v358 = vpack.c.b16 %v324, %v322
    %v359 = vpack.c.b16 %v325, %v323
    %v360 = vpack.c.b16 %v328, %v326
    %v361 = vpack.c.b16 %v329, %v327
    %394 = vmatpush.bf16.msra.mxu0 %v344
    %395 = vmatpush.bf16.msra.mxu0 %v342
    %396 = vmatpush.bf16.msra.mxu0 %v340
    %397 = vmatpush.bf16.msra.mxu0 %v338
    %398 = vmatpush.bf16.msra.mxu0 %v336
    %399 = vmatpush.bf16.msra.mxu0 %v334
    %400 = vmatpush.bf16.msra.mxu0 %v332
    %401 = vmatpush.bf16.msra.mxu0 %v330
    %402 = vmatmul.bf16.gmra.mxu0 %v194
    %v403 = vpop.f32.mrf.mxu0
    %v404 = vadd.f32 %v230, %v403
    %v405 = vpop.f32.mrf.mxu0
    %406 = vdwg.mxu0
    %407 = vmatpush.bf16.msra.mxu0 %v360
    %408 = vmatpush.bf16.msra.mxu0 %v358
    %409 = vmatpush.bf16.msra.mxu0 %v356
    %410 = vmatpush.bf16.msra.mxu0 %v354
    %411 = vmatpush.bf16.msra.mxu0 %v352
    %412 = vmatpush.bf16.msra.mxu0 %v350
    %413 = vmatpush.bf16.msra.mxu0 %v348
    %414 = vmatpush.bf16.msra.mxu0 %v346
    %415 = vmatmul.bf16.gmra.mxu0 %v195
    %v416 = vpop.f32.mrf.mxu0
    %v417 = vadd.f32 %v404, %v416
    %v418 = vpop.f32.mrf.mxu0
    %419 = vdwg.mxu0
    %420 = vmatpush.bf16.msra.mxu0 %v345
    %421 = vmatpush.bf16.msra.mxu0 %v343
    %422 = vmatpush.bf16.msra.mxu0 %v341
    %423 = vmatpush.bf16.msra.mxu0 %v339
    %424 = vmatpush.bf16.msra.mxu0 %v337
    %425 = vmatpush.bf16.msra.mxu0 %v335
    %426 = vmatpush.bf16.msra.mxu0 %v333
    %427 = vmatpush.bf16.msra.mxu0 %v331
    %428 = vmatmul.bf16.gmra.mxu0 %v194
    %v429 = vpop.f32.mrf.mxu0
    %v430 = vadd.f32 %v231, %v429
    %v431 = vpop.f32.mrf.mxu0
    %432 = vdwg.mxu0
    %433 = vmatpush.bf16.msra.mxu0 %v361
    %434 = vmatpush.bf16.msra.mxu0 %v359
    %435 = vmatpush.bf16.msra.mxu0 %v357
    %436 = vmatpush.bf16.msra.mxu0 %v355
    %437 = vmatpush.bf16.msra.mxu0 %v353
    %438 = vmatpush.bf16.msra.mxu0 %v351
    %439 = vmatpush.bf16.msra.mxu0 %v349
    %440 = vmatpush.bf16.msra.mxu0 %v347
    %441 = vmatmul.bf16.gmra.mxu0 %v195
    %v442 = vpop.f32.mrf.mxu0
    %v443 = vadd.f32 %v430, %v442
    %v444 = vpop.f32.mrf.mxu0
    %445 = vdwg.mxu0
    %v446 = vmax.f32 %v417, 0.0
    %v447 = vmax.f32 %v443, 0.0
    %v448 = vld [vmem:[%s7] sm:$0x3]
    %v450 = vperm.slane %v448, 0
    %v451 = vperm.slane %v448, 1
    %v454 = vmul.f32 %v446, %v450
    %v455 = vmul.f32 %v447, %v451
    %v456 = vadd.f32 %v454, %v455
    %457 = vadd.xlane.f32.xlu0 %v456
    %v458 = vpop.xlane.xlu0 %457
    %s459 = sld [smem:[#allocation2]]
    %v460 = vstv %s459
    %v461 = vadd.f32 %v458, %v460
    %vm462 = vcmask 7168
    %463 = vst.msk [vmem:[#allocation10] sm:$0xff] %vm462, %v461
    // Predicated region
    $region54: #{tpu_custom_call.1} parent=1 // pred_check
      _
    $region55: #{tpu_custom_call.1} parent=1 // pred_check_branch
      %465 = sbr.rel (0) target = $region57
    $region56: #{tpu_custom_call.1} parent=1 // pred_region
      // Predicated region
      $region58: #{tpu_custom_call.1} parent=56 // pred_check
        _
      $region59: #{tpu_custom_call.1} parent=56 // pred_check_branch
        %467 = sbr.rel (0) target = $region61
      $region60: #{tpu_custom_call.1} parent=56 // pred_region
        // Predicated region
        $region62: #{tpu_custom_call.1} parent=60 // pred_check
          _
        $region63: #{tpu_custom_call.1} parent=60 // pred_check_branch
          %469 = sbr.rel target = $region65
        $region64: #{tpu_custom_call.1} parent=60 // pred_region
          // Predicated region
          $region77: #{tpu_custom_call.1} parent=64 // pred_check
            _
          $region78: #{tpu_custom_call.1} parent=64 // pred_check_branch
            %485 = sbr.rel (0) target = $region80
          $region79: #{tpu_custom_call.1} parent=64 // pred_region
            %s487 = ssub.s32 4, 1
            loop: start=0, step=1, limit=1
            $region81: #{tpu_custom_call.1} parent=79 // loop_pre_header
              _
            $region82: #{tpu_custom_call.1} parent=79 // loop_header
              %s489 = sphi 0, %s493
              %p490 = scmp.ge.s32.totalorder %s489, 1
              %s494 = sphi [#allocation10], [#allocation10]
              %s495 = sphi %s9, %s9
            $region83: #{tpu_custom_call.1} parent=79 // loop_header_branch
              %492 = sbr.rel (%p490) target = $region87
            $region84: #{tpu_custom_call.1} parent=79 // loop_body
              %v496 = vld [vmem:[%s494] sm:%s487]
              %497 = vst [vmem:[%s495] sm:%s487] %v496
            $region85: #{tpu_custom_call.1} parent=79 // loop_footer
              %s493 = sadd.s32 1, %s489
            $region86: #{tpu_custom_call.1} parent=79 // loop_footer_branch
              %488 = sbr.rel target = $region82
            $region87: #{tpu_custom_call.1} parent=79 // loop_exit
              _
          $region80: #{tpu_custom_call.1} parent=64 // pred_fallthru
            _
        $region65: #{tpu_custom_call.1} parent=60 // pred_fallthru
          _
        // Predicated region
        $region66: #{tpu_custom_call.1} parent=60 // pred_check
          _
        $region67: #{tpu_custom_call.1} parent=60 // pred_check_branch
          %471 = sbr.rel (0) target = $region69
        $region68: #{tpu_custom_call.1} parent=60 // pred_region
          %s473 = ssub.s32 4, 1
          loop: start=0, step=1, limit=1
          $region70: #{tpu_custom_call.1} parent=68 // loop_pre_header
            _
          $region71: #{tpu_custom_call.1} parent=68 // loop_header
            %s475 = sphi 0, %s479
            %p476 = scmp.ge.s32.totalorder %s475, 1
            %s480 = sphi [#allocation10], [#allocation10]
            %s481 = sphi %s9, %s9
          $region72: #{tpu_custom_call.1} parent=68 // loop_header_branch
            %478 = sbr.rel (%p476) target = $region76
          $region73: #{tpu_custom_call.1} parent=68 // loop_body
            %v482 = vld [vmem:[%s480] sm:%s473]
            %483 = vst [vmem:[%s481] sm:%s473] %v482
          $region74: #{tpu_custom_call.1} parent=68 // loop_footer
            %s479 = sadd.s32 1, %s475
          $region75: #{tpu_custom_call.1} parent=68 // loop_footer_branch
            %474 = sbr.rel target = $region71
          $region76: #{tpu_custom_call.1} parent=68 // loop_exit
            _
        $region69: #{tpu_custom_call.1} parent=60 // pred_fallthru
          _
      $region61: #{tpu_custom_call.1} parent=56 // pred_fallthru
        _
      %498 = vnop
    $region57: #{tpu_custom_call.1} parent=1 // pred_fallthru
      _
    // Predicated region
    $region88: #{tpu_custom_call.1} parent=1 // pred_check
      _
    $region89: #{tpu_custom_call.1} parent=1 // pred_check_branch
      %500 = sbr.rel (0) target = $region91
    $region90: #{tpu_custom_call.1} parent=1 // pred_region
      _
    $region91: #{tpu_custom_call.1} parent=1 // pred_fallthru
      _
    %501 = vsyncpa [#allocation4], 1
    %502 = vsyncpa [#allocation6], 1
    %503 = vsyncpa [#allocation9], 1

</llo_original>
